<compile_context>
chip_gen: v5e
topology: v5e:2x2
jax: 0.10.0
libtpu: 0.0.40
codegen_flags: <defaults>
</compile_context>

<pallas_src>
import functools

import jax
import jax.numpy as jnp
from jax.experimental import pallas as pl
from jax.experimental.pallas import tpu as pltpu


def _ceil_to(x, m):
    return -(-x // m) * m


def _padded_block_bytes(shape, dtype):
    """VMEM bytes of a block after (sublane, lane) padding of the last 2 dims."""
    itemsize = jnp.dtype(dtype).itemsize
    sublane = 8 * max(1, 4 // itemsize)
    dims = list(shape)
    dims[-1] = _ceil_to(dims[-1], 128)
    if len(dims) >= 2:
        dims[-2] = _ceil_to(dims[-2], sublane)
    n = 1
    for d in dims:
        n *= int(d)
    return n * itemsize


def _tpu_generation():
    """Best-effort generation sniff: (physical VMEM bytes per core, is_v7x)."""
    try:
        kind = jax.devices()[0].device_kind.lower()
    except Exception:
        return (64 << 20), False
    if "v7" in kind:
        return (64 << 20), True
    return (128 << 20), False       # v5e / v6e (and older) have 128 MiB


# --------------------------------------------------------------------------- #
# Kernels
# --------------------------------------------------------------------------- #
def _conv3x3_banded_kernel(xp_ref, wb_ref, b_ref, o_ref, *, TH, last):
    """Small-channel path: banded weights, lane-dense input and output.

    xp_ref: (1, TH+2, (W+2)*Cin)   zero-padded rows, lane-dense
    wb_ref: (3, (W+2)*Cin, W*Cout) banded weight, one band per kh
    b_ref : (1, W*Cout)            float32 bias tiled across W
    o_ref : (1, TH, W*Cout)        lane-dense output slab (single dense store)
    """
    acc = jnp.dot(xp_ref[0, 0:TH, :], wb_ref[0, :, :],
                  preferred_element_type=jnp.float32)
    acc = acc + jnp.dot(xp_ref[0, 1:TH + 1, :], wb_ref[1, :, :],
                        preferred_element_type=jnp.float32)
    acc = acc + jnp.dot(xp_ref[0, 2:TH + 2, :], wb_ref[2, :, :],
                        preferred_element_type=jnp.float32)
    acc = acc + b_ref[0, :][None, :]
    if not last:
        acc = jnp.maximum(acc, 0.0)
    o_ref[0, :, :] = acc.astype(o_ref.dtype)


def _conv3x3_im2col_kernel(xp_ref, w_ref, b_ref, o_ref, *, TH, W, Cin, Cout,
                           last, fold_taps):
    """Large-channel path: channel-last tiles, single dense 4-D output store.

    xp_ref: (1, TH+2, W+2, Cin)   zero-padded NHWC row tile
    w_ref : (9*Cin, Cout)         3x3 taps stacked on K, row = (kh*3+kw)*Cin+ci
    b_ref : (1, Cout)             float32 bias
    o_ref : (1, TH, W, Cout)      dense output block (full W and Cout)
    """
    if fold_taps:
        # Cin lane-aligned: fold all 9 taps into K -> one fat MXU matmul.
        cols = [xp_ref[0, kh:kh + TH, kw:kw + W, :]
                for kh in range(3) for kw in range(3)]
        patch = jnp.concatenate(cols, axis=-1).reshape(TH * W, 9 * Cin)
        acc = jnp.dot(patch, w_ref[...], preferred_element_type=jnp.float32)
    else:
        acc = jnp.zeros((TH * W, Cout), dtype=jnp.float32)
        for kh in range(3):
            for kw in range(3):
                t = kh * 3 + kw
                patch = xp_ref[0, kh:kh + TH, kw:kw + W, :].reshape(TH * W, Cin)
                acc = acc + jnp.dot(patch, w_ref[t * Cin:(t + 1) * Cin, :],
                                    preferred_element_type=jnp.float32)
    acc = acc + b_ref[0, :][None, :]
    if not last:
        acc = jnp.maximum(acc, 0.0)
    o_ref[0, :, :, :] = acc.astype(o_ref.dtype).reshape(TH, W, Cout)


# --------------------------------------------------------------------------- #
# Wrapper
# --------------------------------------------------------------------------- #
@functools.partial(jax.jit, static_argnames=("last", "tile_h", "compute_dtype"))
def convlayer_forward(x_nchw, weight, bias, *, last, tile_h=None,
                      compute_dtype=jnp.bfloat16):
    """x_nchw: (N, Cin, H, W); weight: (Cout, Cin, 3, 3); bias: (Cout,).

    compute_dtype feeds the MXU (bf16 by default on all generations); the
    accumulator, bias add, ReLU and the output stay float32 (v5e-safe).
    """
    N, Cin, H, W = x_nchw.shape
    Cout = weight.shape[0]
    out_dtype = x_nchw.dtype
    if compute_dtype is None:
        compute_dtype = x_nchw.dtype
    c_dtype = jnp.dtype(compute_dtype)
    itemsize = c_dtype.itemsize
    out_itemsize = jnp.dtype(out_dtype).itemsize

    vmem_cap, is_v7x = _tpu_generation()

    # ---- path selection ----------------------------------------------------
    band_bytes = 3 * (W + 2) * Cin * W * Cout * itemsize
    banded = (band_bytes <= (6 << 20)
              and (W + 2) * Cin <= 4096 and W * Cout <= 8192)
    fold_taps = (Cin % 128 == 0)

    # ---- per-row VMEM cost for tile-height selection -----------------------
    if banded:
        in_row = _ceil_to((W + 2) * Cin, 128) * itemsize
        out_row = _ceil_to(W * Cout, 128) * out_itemsize
        acc_row = _ceil_to(W * Cout, 128) * 4
        patch_row = 0
        weight_res = 2 * _padded_block_bytes((3, (W + 2) * Cin, W * Cout), c_dtype)
    else:
        in_row = (W + 2) * _ceil_to(Cin, 128) * itemsize
        out_row = W * _ceil_to(Cout, 128) * out_itemsize
        acc_row = W * _ceil_to(Cout, 128) * 4
        patch_row = (9 * W * _ceil_to(Cin, 128) * itemsize) if fold_taps else 0
        weight_res = 2 * _padded_block_bytes((9 * Cin, Cout), c_dtype)

    # ---- tile height (TH output rows per grid step) ------------------------
    if tile_h is not None:
        TH = int(tile_h)
        if TH > H or H % TH != 0 or (TH != H and TH % 8 != 0):
            raise ValueError(
                f"tile_h={tile_h} must divide H={H} and be a multiple of 8")
    else:
        budget = min(vmem_cap // 4, 32 << 20) - weight_res - (2 << 20)
        budget = max(budget, 1 << 20)
        per_row = 2 * in_row + 2 * out_row + 3 * acc_row + patch_row
        cands = [H] + sorted((t for t in range(8, H, 8) if H % t == 0),
                             reverse=True)
        # v7x has 2 TensorCores: with a single image, force >= 2 grid steps.
        if is_v7x and N == 1 and len(cands) > 1:
            cands = cands[1:]
        TH = cands[-1]
        for th in cands:
            if (th + 2) * per_row <= budget:
                TH = th
                break
    n_tiles = H // TH

    # ---- host-side prep (fused under jit): NCHW->NHWC, zero pad, cast ------
    x_pad = jnp.pad(jnp.transpose(x_nchw, (0, 2, 3, 1)).astype(c_dtype),
                    ((0, 0), (1, 1), (1, 1), (0, 0)))      # (N, H+2, W+2, Cin)

    if banded:
        # Lane-dense padded rows: (N, H+2, (W+2)*Cin).
        x_lane = x_pad.reshape(N, H + 2, (W + 2) * Cin)
        if n_tiles == 1:
            x_in = x_lane
        else:
            rows = (jnp.arange(n_tiles, dtype=jnp.int32)[:, None] * TH
                    + jnp.arange(TH + 2, dtype=jnp.int32)[None, :])
            x_in = x_lane[:, rows].reshape(N * n_tiles, TH + 2, (W + 2) * Cin)

        # Banded weights: wb[kh, (w+kw)*Cin + ci, w*Cout + co] = weight[co,ci,kh,kw]
        w_k = jnp.transpose(weight, (2, 3, 1, 0)).astype(jnp.float32)  # (kh,kw,Cin,Cout)
        bands = []
        for kh in range(3):
            a = jnp.zeros((W + 2, Cin, W, Cout), jnp.float32)
            for kw in range(3):
                shift = jnp.eye(W + 2, W, k=-kw, dtype=jnp.float32)   # [p,w]=1 iff p==w+kw
                a = a + shift[:, None, :, None] * w_k[kh, kw][None, :, None, :]
            bands.append(a.reshape((W + 2) * Cin, W * Cout))
        wb = jnp.stack(bands, axis=0).astype(c_dtype)       # (3, (W+2)Cin, W*Cout)
        b_in = jnp.tile(bias.astype(jnp.float32), W).reshape(1, W * Cout)

        in_specs = [
            pl.BlockSpec((1, TH + 2, (W + 2) * Cin),
                         lambda n, t: (n * n_tiles + t, 0, 0)),
            pl.BlockSpec((3, (W + 2) * Cin, W * Cout), lambda n, t: (0, 0, 0)),
            pl.BlockSpec((1, W * Cout), lambda n, t: (0, 0)),
        ]
        out_spec = pl.BlockSpec((1, TH, W * Cout), lambda n, t: (n, t, 0))
        out_shape = jax.ShapeDtypeStruct((N, H, W * Cout), out_dtype)
        kernel = functools.partial(_conv3x3_banded_kernel, TH=TH, last=last)
        args = (x_in, wb, b_in)

        in_blk = _padded_block_bytes((1, TH + 2, (W + 2) * Cin), c_dtype)
        out_blk = _padded_block_bytes((1, TH, W * Cout), out_dtype)
        w_blk = _padded_block_bytes((3, (W + 2) * Cin, W * Cout), c_dtype)
        b_blk = _padded_block_bytes((1, W * Cout), jnp.float32)
        tmp = 3 * TH * _ceil_to(W * Cout, 128) * 4            # f32 partials
    else:
        if n_tiles == 1:
            x_in = x_pad
        else:
            rows = (jnp.arange(n_tiles, dtype=jnp.int32)[:, None] * TH
                    + jnp.arange(TH + 2, dtype=jnp.int32)[None, :])
            x_in = x_pad[:, rows].reshape(N * n_tiles, TH + 2, W + 2, Cin)

        w_mat = jnp.transpose(weight, (2, 3, 1, 0)).reshape(9 * Cin, Cout)
        w_mat = w_mat.astype(c_dtype)
        b_in = bias.reshape(1, Cout).astype(jnp.float32)

        in_specs = [
            pl.BlockSpec((1, TH + 2, W + 2, Cin),
                         lambda n, t: (n * n_tiles + t, 0, 0, 0)),
            pl.BlockSpec((9 * Cin, Cout), lambda n, t: (0, 0)),
            pl.BlockSpec((1, Cout), lambda n, t: (0, 0)),
        ]
        out_spec = pl.BlockSpec((1, TH, W, Cout), lambda n, t: (n, t, 0, 0))
        out_shape = jax.ShapeDtypeStruct((N, H, W, Cout), out_dtype)
        kernel = functools.partial(_conv3x3_im2col_kernel, TH=TH, W=W, Cin=Cin,
                                   Cout=Cout, last=last, fold_taps=fold_taps)
        args = (x_in, w_mat, b_in)

        in_blk = _padded_block_bytes((1, TH + 2, W + 2, Cin), c_dtype)
        out_blk = _padded_block_bytes((1, TH, W, Cout), out_dtype)
        w_blk = _padded_block_bytes((9 * Cin, Cout), c_dtype)
        b_blk = _padded_block_bytes((1, Cout), jnp.float32)
        tmp = ((TH * W * 9 * _ceil_to(Cin, 128) * itemsize if fold_taps else 0)
               + 3 * TH * W * _ceil_to(Cout, 128) * 4)

    # ---- scoped VMEM limit (blocks x2 for double-buffering + temporaries) --
    est = 2 * (in_blk + out_blk + w_blk + b_blk) + tmp + (4 << 20)
    cap = (56 << 20) if is_v7x else (100 << 20)
    vmem_limit = int(min(max(est, 16 << 20), cap))

    out = pl.pallas_call(
        kernel,
        out_shape=out_shape,
        grid_spec=pltpu.PrefetchScalarGridSpec(
            num_scalar_prefetch=0,
            grid=(N, n_tiles),
            in_specs=in_specs,
            out_specs=out_spec,
        ),
        compiler_params=pltpu.CompilerParams(
            dimension_semantics=("parallel", "parallel"),
            vmem_limit_bytes=vmem_limit,
        ),
    )(*args)

    if banded:
        out = out.reshape(N, H, W, Cout)
    # NHWC -> NCHW (fused post-pass under jit).
    return jnp.transpose(out, (0, 3, 1, 2))


if __name__ == "__main__":
    key = jax.random.PRNGKey(0)
    k_x, k_w, k_b = jax.random.split(key, 3)

    N, Cin, Cout, H, W = 2, 4, 8, 16, 16
    last = False  # convlayer(..., last=False): conv + ReLU

    x = jax.random.normal(k_x, (N, Cin, H, W), dtype=jnp.float32)
    # Deterministic parameter init (Kaiming-uniform-ish scale, nn.Conv2d shapes).
    fan_in = Cin * 3 * 3
    bound = 1.0 / (fan_in ** 0.5)
    weight = jax.random.uniform(k_w, (Cout, Cin, 3, 3),
                                minval=-bound, maxval=bound, dtype=jnp.float32)
    bias = jax.random.uniform(k_b, (Cout,),
                              minval=-bound, maxval=bound, dtype=jnp.float32)

    def torch_ref(xx, ww):
        y = jax.lax.conv_general_dilated(
            xx, ww, window_strides=(1, 1), padding=((1, 1), (1, 1)),
            dimension_numbers=("NCHW", "OIHW", "NCHW")) + bias[None, :, None, None]
        return jnp.maximum(y, 0.0) if not last else y

    ref = torch_ref(x, weight)

    # --- f32 MXU path, auto tile (TH=H, grid (2,1)). Strict check. ----------
    y = jax.block_until_ready(
        convlayer_forward(x, weight, bias, last=last, compute_dtype=jnp.float32))
    assert y.shape == (N, Cout, H, W)
    assert jnp.allclose(y, ref, atol=1e-4, rtol=1e-4)

    # --- f32, explicit row tiling (grid (2,2)) to exercise the halo path. ---
    y_t = jax.block_until_ready(
        convlayer_forward(x, weight, bias, last=last, tile_h=8,
                          compute_dtype=jnp.float32))
    assert jnp.allclose(y_t, ref, atol=1e-4, rtol=1e-4)

    # --- default bf16 MXU inputs (f32 accumulate / bias / ReLU / output). ---
    y_bf = jax.block_until_ready(
        convlayer_forward(x, weight, bias, last=last))
    x_r = x.astype(jnp.bfloat16).astype(jnp.float32)
    w_r = weight.astype(jnp.bfloat16).astype(jnp.float32)
    assert y_bf.shape == (N, Cout, H, W) and y_bf.dtype == x.dtype
    assert jnp.allclose(y_bf, torch_ref(x_r, w_r), atol=2e-3, rtol=2e-3)

    print("KERNEL_OK")
</pallas_src>

<mosaic_0001>
module attributes {stable_mosaic.version = 11 : i64} {
  func.func @_conv3x3_banded_kernel(%arg0: i32, %arg1: i32, %arg2: memref<1x18x72xf32, #tpu.memory_space<vmem>>, %arg3: memref<3x72x128xf32, #tpu.memory_space<vmem>>, %arg4: memref<1x128xf32, #tpu.memory_space<vmem>>, %arg5: memref<1x16x128xf32, #tpu.memory_space<vmem>>) attributes {dimension_semantics = [#tpu.dimension_semantics<parallel>, #tpu.dimension_semantics<parallel>], iteration_bounds = array<i64: 2, 1>, scalar_prefetch = 0 : i64, scratch_operands = 0 : i64, tpu.core_type = #tpu.core_type<tc>, window_params = [{transform_indices = @transform_0, window_bounds = array<i64: 1, 18, 72>}, {pipeline_mode = #tpu.pipeline_mode<synchronous>, transform_indices = @transform_1, window_bounds = array<i64: 3, 72, 128>}, {pipeline_mode = #tpu.pipeline_mode<synchronous>, transform_indices = @transform_2, window_bounds = array<i64: 1, 128>}, {transform_indices = @transform_3, window_bounds = array<i64: 1, 16, 128>}]} {
    %c0 = arith.constant 0 : index
    %c0_0 = arith.constant 0 : index
    %c0_1 = arith.constant 0 : index
    %0 = vector.load %arg2[%c0, %c0_0, %c0_1] : memref<1x18x72xf32, #tpu.memory_space<vmem>>, vector<1x16x72xf32>
    %1 = vector.shape_cast %0 : vector<1x16x72xf32> to vector<16x72xf32>
    %c0_2 = arith.constant 0 : index
    %c0_3 = arith.constant 0 : index
    %c0_4 = arith.constant 0 : index
    %2 = vector.load %arg3[%c0_2, %c0_3, %c0_4] : memref<3x72x128xf32, #tpu.memory_space<vmem>>, vector<1x72x128xf32>
    %3 = vector.shape_cast %2 : vector<1x72x128xf32> to vector<72x128xf32>
    %cst = arith.constant dense<0.000000e+00> : vector<16x128xf32>
    %4 = tpu.matmul %1, %3, %cst {dimension_numbers = #tpu.dot_dimension_numbers<[1], [0], [0], [1], [0, 0, 1, 1], [], []>} : vector<16x72xf32>, vector<72x128xf32>, vector<16x128xf32> -> vector<16x128xf32>
    %c0_5 = arith.constant 0 : index
    %c1 = arith.constant 1 : index
    %c0_6 = arith.constant 0 : index
    %5 = vector.load %arg2[%c0_5, %c1, %c0_6] : memref<1x18x72xf32, #tpu.memory_space<vmem>>, vector<1x16x72xf32>
    %6 = vector.shape_cast %5 : vector<1x16x72xf32> to vector<16x72xf32>
    %c1_7 = arith.constant 1 : index
    %c0_8 = arith.constant 0 : index
    %c0_9 = arith.constant 0 : index
    %7 = vector.load %arg3[%c1_7, %c0_8, %c0_9] : memref<3x72x128xf32, #tpu.memory_space<vmem>>, vector<1x72x128xf32>
    %8 = vector.shape_cast %7 : vector<1x72x128xf32> to vector<72x128xf32>
    %cst_10 = arith.constant dense<0.000000e+00> : vector<16x128xf32>
    %9 = tpu.matmul %6, %8, %cst_10 {dimension_numbers = #tpu.dot_dimension_numbers<[1], [0], [0], [1], [0, 0, 1, 1], [], []>} : vector<16x72xf32>, vector<72x128xf32>, vector<16x128xf32> -> vector<16x128xf32>
    %10 = arith.addf %4, %9 : vector<16x128xf32>
    %c0_11 = arith.constant 0 : index
    %c2 = arith.constant 2 : index
    %c0_12 = arith.constant 0 : index
    %11 = vector.load %arg2[%c0_11, %c2, %c0_12] : memref<1x18x72xf32, #tpu.memory_space<vmem>>, vector<1x16x72xf32>
    %12 = vector.shape_cast %11 : vector<1x16x72xf32> to vector<16x72xf32>
    %c2_13 = arith.constant 2 : index
    %c0_14 = arith.constant 0 : index
    %c0_15 = arith.constant 0 : index
    %13 = vector.load %arg3[%c2_13, %c0_14, %c0_15] : memref<3x72x128xf32, #tpu.memory_space<vmem>>, vector<1x72x128xf32>
    %14 = vector.shape_cast %13 : vector<1x72x128xf32> to vector<72x128xf32>
    %cst_16 = arith.constant dense<0.000000e+00> : vector<16x128xf32>
    %15 = tpu.matmul %12, %14, %cst_16 {dimension_numbers = #tpu.dot_dimension_numbers<[1], [0], [0], [1], [0, 0, 1, 1], [], []>} : vector<16x72xf32>, vector<72x128xf32>, vector<16x128xf32> -> vector<16x128xf32>
    %16 = arith.addf %10, %15 : vector<16x128xf32>
    %c0_17 = arith.constant 0 : index
    %c0_18 = arith.constant 0 : index
    %17 = vector.load %arg4[%c0_17, %c0_18] : memref<1x128xf32, #tpu.memory_space<vmem>>, vector<1x128xf32>
    %18 = vector.shape_cast %17 : vector<1x128xf32> to vector<128xf32>
    %19 = vector.shape_cast %18 : vector<128xf32> to vector<1x128xf32>
    %20 = vector.broadcast %19 : vector<1x128xf32> to vector<16x128xf32>
    %21 = arith.addf %16, %20 : vector<16x128xf32>
    %cst_19 = arith.constant 0.000000e+00 : f32
    %22 = vector.broadcast %cst_19 : f32 to vector<16x128xf32>
    %23 = arith.maximumf %21, %22 : vector<16x128xf32>
    %c0_20 = arith.constant 0 : index
    %c0_21 = arith.constant 0 : index
    %c0_22 = arith.constant 0 : index
    %24 = vector.load %arg5[%c0_20, %c0_21, %c0_22] : memref<1x16x128xf32, #tpu.memory_space<vmem>>, vector<1x16x128xf32>
    %25 = vector.shape_cast %24 : vector<1x16x128xf32> to vector<16x128xf32>
    %26 = vector.shape_cast %23 : vector<16x128xf32> to vector<1x16x128xf32>
    tpu.vector_store %arg5[%c0_20, %c0_21, %c0_22], %26 {strides = array<i32>} : memref<1x16x128xf32, #tpu.memory_space<vmem>>, vector<1x16x128xf32>,
    return
  }
  func.func @transform_0(%arg0: i32, %arg1: i32) -> (i32, i32, i32) {
    %c1_i32 = arith.constant 1 : i32
    %0 = arith.muli %arg0, %c1_i32 : i32
    %1 = arith.addi %0, %arg1 : i32
    %c0_i32 = arith.constant 0 : i32
    %c0_i32_0 = arith.constant 0 : i32
    %c0_i32_1 = arith.constant 0 : i32
    return %1, %c0_i32, %c0_i32_0 : i32, i32, i32
  }
  func.func @transform_1(%arg0: i32, %arg1: i32) -> (i32, i32, i32) {
    %c0_i32 = arith.constant 0 : i32
    %c0_i32_0 = arith.constant 0 : i32
    %c0_i32_1 = arith.constant 0 : i32
    %c0_i32_2 = arith.constant 0 : i32
    return %c0_i32, %c0_i32_0, %c0_i32_1 : i32, i32, i32
  }
  func.func @transform_2(%arg0: i32, %arg1: i32) -> (i32, i32) {
    %c0_i32 = arith.constant 0 : i32
    %c0_i32_0 = arith.constant 0 : i32
    %c0_i32_1 = arith.constant 0 : i32
    return %c0_i32, %c0_i32_0 : i32, i32
  }
  func.func @transform_3(%arg0: i32, %arg1: i32) -> (i32, i32, i32) {
    %c0_i32 = arith.constant 0 : i32
    %c0_i32_0 = arith.constant 0 : i32
    return %arg0, %arg1, %c0_i32 : i32, i32, i32
  }
}

</mosaic_0001>

<llo_original>
// kernel: tile.8
$region0: #{tile.8}
  #allocation0 [shape = 's32[1]{0}', space=sflag, size = 0x4, scoped, tag = 'scoped memory for tile.8']
  %s0 = inlined_call_operand.vmem [shape: f32[8], index: 0, kind: input, shape index: {}]
  %s1 = inlined_call_operand.vmem [shape: f32[16,8], index: 1, kind: output, shape index: {}]
  // Predicated region
  $region2: #{tile.8} parent=0 // pred_check
    _
  $region3: #{tile.8} parent=0 // pred_check_branch
    %3 = sbr.rel (0) target = $region5
  $region4: #{tile.8} parent=0 // pred_region
    _
  $region5: #{tile.8} parent=0 // pred_fallthru
    _
  %v4 = vld [vmem:[%s0] ss:$0 sm:$0xff]
  %5 = vst [vmem:[%s1] sm:$0xff] %v4
  %s6 = scalar_lea.vmem %s1, 8
  %7 = vst [vmem:[%s6] sm:$0xff] %v4

// kernel: tile.9
$region0: #{tile.9}
  %s0 = inlined_call_operand.vmem [shape: f32[16,8], index: 0, kind: input, shape index: {}]
  %s1 = inlined_call_operand.vmem [shape: f32[1,128], index: 1, kind: output, shape index: {}]
  $region1: #{tile.9} parent=0
    #allocation0 [shape = 'u8[4096]{0}', space=vmem, size = 0x1000, scoped, tag = 'scoped mem for output reshape']
    %v2 = vld [vmem:[%s0] sm:$0x1]
    %vm3 = vcmask 64512
    %4 = vst.msk [vmem:[#allocation0] sm:$0x1] %vm3, %v2
    %s5 = scalar_lea.vmem %s0, 15
    %v6 = vld [vmem:[%s5] sm:$0x1]
    %7 = vrot.lane.b32.xlu0 %v6, 120
    %v8 = vpop.permute.xlu0 %7
    %vm9 = vcmask 1048512
    %10 = vst.msk [vmem:[#allocation0] sm:$0x1] %vm9, %v8
    %s11 = scalar_lea.vmem %s0, 14
    %v12 = vld [vmem:[%s11] sm:$0x1]
    %13 = vrot.lane.b32.xlu0 %v12, 112
    %v14 = vpop.permute.xlu0 %13
    %vm15 = vcmask 982912
    %16 = vst.msk [vmem:[#allocation0] sm:$0x1] %vm15, %v14
    %s17 = scalar_lea.vmem %s0, 13
    %v18 = vld [vmem:[%s17] sm:$0x1]
    %19 = vrot.lane.b32.xlu0 %v18, 104
    %v20 = vpop.permute.xlu0 %19
    %vm21 = vcmask 917312
    %22 = vst.msk [vmem:[#allocation0] sm:$0x1] %vm21, %v20
    %s23 = scalar_lea.vmem %s0, 12
    %v24 = vld [vmem:[%s23] sm:$0x1]
    %25 = vrot.lane.b32.xlu0 %v24, 96
    %v26 = vpop.permute.xlu0 %25
    %vm27 = vcmask 851712
    %28 = vst.msk [vmem:[#allocation0] sm:$0x1] %vm27, %v26
    %s29 = scalar_lea.vmem %s0, 11
    %v30 = vld [vmem:[%s29] sm:$0x1]
    %31 = vrot.lane.b32.xlu0 %v30, 88
    %v32 = vpop.permute.xlu0 %31
    %vm33 = vcmask 786112
    %34 = vst.msk [vmem:[#allocation0] sm:$0x1] %vm33, %v32
    %s35 = scalar_lea.vmem %s0, 10
    %v36 = vld [vmem:[%s35] sm:$0x1]
    %37 = vrot.lane.b32.xlu0 %v36, 80
    %v38 = vpop.permute.xlu0 %37
    %vm39 = vcmask 720512
    %40 = vst.msk [vmem:[#allocation0] sm:$0x1] %vm39, %v38
    %s41 = scalar_lea.vmem %s0, 9
    %v42 = vld [vmem:[%s41] sm:$0x1]
    %43 = vrot.lane.b32.xlu0 %v42, 72
    %v44 = vpop.permute.xlu0 %43
    %vm45 = vcmask 654912
    %46 = vst.msk [vmem:[#allocation0] sm:$0x1] %vm45, %v44
    %s47 = scalar_lea.vmem %s0, 8
    %v48 = vld [vmem:[%s47] sm:$0x1]
    %49 = vrot.lane.b32.xlu0 %v48, 64
    %v50 = vpop.permute.xlu0 %49
    %vm51 = vcmask 589312
    %52 = vst.msk [vmem:[#allocation0] sm:$0x1] %vm51, %v50
    %s53 = scalar_lea.vmem %s0, 7
    %v54 = vld [vmem:[%s53] sm:$0x1]
    %55 = vrot.lane.b32.xlu0 %v54, 56
    %v56 = vpop.permute.xlu0 %55
    %vm57 = vcmask 523712
    %58 = vst.msk [vmem:[#allocation0] sm:$0x1] %vm57, %v56
    %s59 = scalar_lea.vmem %s0, 6
    %v60 = vld [vmem:[%s59] sm:$0x1]
    %61 = vrot.lane.b32.xlu0 %v60, 48
    %v62 = vpop.permute.xlu0 %61
    %vm63 = vcmask 458112
    %64 = vst.msk [vmem:[#allocation0] sm:$0x1] %vm63, %v62
    %s65 = scalar_lea.vmem %s0, 5
    %v66 = vld [vmem:[%s65] sm:$0x1]
    %67 = vrot.lane.b32.xlu0 %v66, 40
    %v68 = vpop.permute.xlu0 %67
    %vm69 = vcmask 392512
    %70 = vst.msk [vmem:[#allocation0] sm:$0x1] %vm69, %v68
    %s71 = scalar_lea.vmem %s0, 4
    %v72 = vld [vmem:[%s71] sm:$0x1]
    %73 = vrot.lane.b32.xlu0 %v72, 32
    %v74 = vpop.permute.xlu0 %73
    %vm75 = vcmask 326912
    %76 = vst.msk [vmem:[#allocation0] sm:$0x1] %vm75, %v74
    %s77 = scalar_lea.vmem %s0, 3
    %v78 = vld [vmem:[%s77] sm:$0x1]
    %79 = vrot.lane.b32.xlu0 %v78, 24
    %v80 = vpop.permute.xlu0 %79
    %vm81 = vcmask 261312
    %82 = vst.msk [vmem:[#allocation0] sm:$0x1] %vm81, %v80
    %s83 = scalar_lea.vmem %s0, 2
    %v84 = vld [vmem:[%s83] sm:$0x1]
    %85 = vrot.lane.b32.xlu0 %v84, 16
    %v86 = vpop.permute.xlu0 %85
    %vm87 = vcmask 195712
    %88 = vst.msk [vmem:[#allocation0] sm:$0x1] %vm87, %v86
    %s89 = scalar_lea.vmem %s0, 1
    %v90 = vld [vmem:[%s89] sm:$0x1]
    %91 = vrot.lane.b32.xlu0 %v90, 8
    %v92 = vpop.permute.xlu0 %91
    %vm93 = vcmask 130112
    %94 = vst.msk [vmem:[#allocation0] sm:$0x1] %vm93, %v92
    %s96 = ssub.s32 2, 1
    %v97 = vld [vmem:[#allocation0] sm:%s96]
    %s99 = ssub.s32 2, 1
    %100 = vst [vmem:[%s1] sm:%s99] %v97

// kernel: convlayer_forward.1
$region0: #{convlayer_forward.1}
  #allocation0 [shape = 'u32[]', space=smem, size = 0x4, offset = 0x4, fixed_abs, tag = 'smem constant byte address 0x4 - core index']
  #allocation1 [shape = 'u32[72,128]{1,0:T(1,128)}', space=vmem, size = 0x9000, scoped, tag = 'internal scratch']
  %s0 = inlined_call_operand.vmem [shape: f32[2,18,72], index: 0, kind: input, shape index: {}]
  %s1 = inlined_call_operand.vmem [shape: f32[3,72,128], index: 1, kind: input, shape index: {}]
  %s2 = inlined_call_operand.vmem [shape: f32[1,128], index: 2, kind: input, shape index: {}]
  %s3 = inlined_call_operand.vmem [shape: f32[2,16,128], index: 3, kind: output, shape index: {}]
  %s4 = sld [smem:[#allocation0]]
  $region45: #{convlayer_forward.1} parent=0
    _
  %s6 = ssub.s32 1, %s4
  %s7 = scalar_select 0, %s6, %s4
  loop: start=0, step=1, limit=4
  $region2: #{convlayer_forward.1} parent=0 // loop_pre_header
    _
  $region3: #{convlayer_forward.1} parent=0 // loop_header
    %s9 = sphi 0, %s13
    %p10 = scmp.ge.s32.totalorder %s9, 4
    %s16 = sphi 0, %s28
    %s17 = sphi 0, %s24
    %s18 = sphi 0, %s16
    %s19 = sphi 0, %s17
    %s20 = sphi 0, %s18
    %s21 = sphi 0, %s19
    %s33 = sphi 0, %s35
    %s36 = sphi 0, %s33
    %s37 = sphi 0, %s36
    %s53 = sphi 0, %s37
    %s57 = sphi 0, %s57
    %s59 = sphi 0, %s57
    %s60 = sphi 0, %s59
    %s74 = sphi 0, %s60
    %s78 = sphi 0, %s78
    %s80 = sphi 0, %s78
    %s81 = sphi 0, %s80
    %s95 = sphi 0, %s81
    %s103 = sphi 0, %s105
    %s106 = sphi 0, %s103
    %s107 = sphi 0, %s106
    %s123 = sphi 0, %s107
  $region4: #{convlayer_forward.1} parent=0 // loop_header_branch
    %12 = sbr.rel (%p10) target = $region8
  $region5: #{convlayer_forward.1} parent=0 // loop_body
    %s14 = ssub.s32 %s9, 1
    %s15 = ssub.s32 %s9, 2
    %s22 = sadd.s32 1, %s17
    %p23 = scmp.ge.s32.totalorder %s22, 1
    %s24 = scalar_select %p23, 0, %s22
    %s25 = sadd.s32 1, %s16
    %s26 = scalar_select %p23, %s25, %s16
    %p27 = scmp.ge.s32.totalorder %s26, 2
    %s28 = scalar_select %p27, 0, %s26
    %s29 = sadd.s32 %s16, %s17
    %s30 = sadd.s32 %s28, %s24
    %s31 = ssub.s32 %s29, %s30
    %p32 = scmp.eq.s32.totalorder %s31, 0
    %s34 = sadd.s32 %s33, 1
    %s35 = scalar_select %p32, %s33, %s34
    %p38 = pneg %p32
    %p39 = scmp.eq.s32.totalorder %s9, 1
    %p40 = por %p38, %p39
    %p41 = scmp.ne.s32.totalorder %s33, %s36
    %p42 = scmp.eq.s32.totalorder %s9, 0
    %p43 = por %p41, %p42
    %p44 = scmp.ne.s32.totalorder %s33, %s36
    %p45 = scmp.eq.s32.totalorder %s14, 1
    %p46 = por %p44, %p45
    %p47 = scmp.ne.s32.totalorder %s36, %s37
    %p48 = scmp.eq.s32.totalorder %s14, 0
    %p49 = por %p47, %p48
    %p50 = scmp.ne.s32.totalorder %s36, %s37
    %p51 = scmp.eq.s32.totalorder %s15, 1
    %p52 = por %p50, %p51
    %p54 = scmp.ne.s32.totalorder %s37, %s53
    %p55 = scmp.eq.s32.totalorder %s15, 0
    %p56 = por %p54, %p55
    %s58 = sadd.s32 %s57, 1
    %p61 = scmp.eq.s32.totalorder %s9, 1
    %p62 = scmp.ne.s32.totalorder %s57, %s59
    %p63 = scmp.eq.s32.totalorder %s9, 0
    %p64 = por %p62, %p63
    %p65 = scmp.ne.s32.totalorder %s57, %s59
    %p66 = scmp.eq.s32.totalorder %s14, 1
    %p67 = por %p65, %p66
    %p68 = scmp.ne.s32.totalorder %s59, %s60
    %p69 = scmp.eq.s32.totalorder %s14, 0
    %p70 = por %p68, %p69
    %p71 = scmp.ne.s32.totalorder %s59, %s60
    %p72 = scmp.eq.s32.totalorder %s15, 1
    %p73 = por %p71, %p72
    %p75 = scmp.ne.s32.totalorder %s60, %s74
    %p76 = scmp.eq.s32.totalorder %s15, 0
    %p77 = por %p75, %p76
    %s79 = sadd.s32 %s78, 1
    %p82 = scmp.eq.s32.totalorder %s9, 1
    %p83 = scmp.ne.s32.totalorder %s78, %s80
    %p84 = scmp.eq.s32.totalorder %s9, 0
    %p85 = por %p83, %p84
    %p86 = scmp.ne.s32.totalorder %s78, %s80
    %p87 = scmp.eq.s32.totalorder %s14, 1
    %p88 = por %p86, %p87
    %p89 = scmp.ne.s32.totalorder %s80, %s81
    %p90 = scmp.eq.s32.totalorder %s14, 0
    %p91 = por %p89, %p90
    %p92 = scmp.ne.s32.totalorder %s80, %s81
    %p93 = scmp.eq.s32.totalorder %s15, 1
    %p94 = por %p92, %p93
    %p96 = scmp.ne.s32.totalorder %s81, %s95
    %p97 = scmp.eq.s32.totalorder %s15, 0
    %p98 = por %p96, %p97
    %s99 = ssub.s32 %s16, %s28
    %s100 = ssub.s32 %s17, %s24
    %s101 = sor.u32 %s99, %s100
    %p102 = scmp.eq.s32.totalorder %s101, 0
    %s104 = sadd.s32 %s103, 1
    %s105 = scalar_select %p102, %s103, %s104
    %p108 = pneg %p102
    %p109 = scmp.eq.s32.totalorder %s9, 1
    %p110 = por %p108, %p109
    %p111 = scmp.ne.s32.totalorder %s103, %s106
    %p112 = scmp.eq.s32.totalorder %s9, 0
    %p113 = por %p111, %p112
    %p114 = scmp.ne.s32.totalorder %s103, %s106
    %p115 = scmp.eq.s32.totalorder %s14, 1
    %p116 = por %p114, %p115
    %p117 = scmp.ne.s32.totalorder %s106, %s107
    %p118 = scmp.eq.s32.totalorder %s14, 0
    %p119 = por %p117, %p118
    %p120 = scmp.ne.s32.totalorder %s106, %s107
    %p121 = scmp.eq.s32.totalorder %s15, 1
    %p122 = por %p120, %p121
    %p124 = scmp.ne.s32.totalorder %s107, %s123
    %p125 = scmp.eq.s32.totalorder %s15, 0
    %p126 = por %p124, %p125
    %p127 = scmp.le.s32.totalorder 1, %s9
    %p128 = scmp.lt.s32.totalorder %s9, 3
    %p129 = pnand %p127, %p128
    %p130 = pneg %p129
    // Predicated region
    $region9: #{convlayer_forward.1} parent=5 // pred_check
      _
    $region10: #{convlayer_forward.1} parent=5 // pred_check_branch
      %132 = sbr.rel (%p129) target = $region12
    $region11: #{convlayer_forward.1} parent=5 // pred_region
      %s133 = ssub.s32 %s9, 1
      // Predicated region
      $region13: #{convlayer_forward.1} parent=11 // pred_check
        %p134 = pneg %p70
      $region14: #{convlayer_forward.1} parent=11 // pred_check_branch
        %136 = sbr.rel (%p134) target = $region16
      $region15: #{convlayer_forward.1} parent=11 // pred_region
        _
      $region16: #{convlayer_forward.1} parent=11 // pred_fallthru
        _
      // Predicated region
      $region17: #{convlayer_forward.1} parent=11 // pred_check
        %p137 = pneg %p91
      $region18: #{convlayer_forward.1} parent=11 // pred_check_branch
        %139 = sbr.rel (%p137) target = $region20
      $region19: #{convlayer_forward.1} parent=11 // pred_region
        _
      $region20: #{convlayer_forward.1} parent=11 // pred_fallthru
        _
    $region12: #{convlayer_forward.1} parent=5 // pred_fallthru
      _
    %p140 = scmp.lt.s32.totalorder %s9, 2
    // Predicated region
    $region21: #{convlayer_forward.1} parent=5 // pred_check
      %p141 = pneg %p140
    $region22: #{convlayer_forward.1} parent=5 // pred_check_branch
      %143 = sbr.rel (%p141) target = $region24
    $region23: #{convlayer_forward.1} parent=5 // pred_region
      // Predicated region
      $region25: #{convlayer_forward.1} parent=23 // pred_check
        %p144 = pneg %p43
      $region26: #{convlayer_forward.1} parent=23 // pred_check_branch
        %146 = sbr.rel (%p144) target = $region28
      $region27: #{convlayer_forward.1} parent=23 // pred_region
        %s147 = sadd.s32 %s16, %s17
        %p148 = scmp.lt.s32.totalorder %s147, 1
        %s149 = scalar_select %p148, %s147, 1
        %s150 = smul.addr %s149, 3
        %s151 = smul.addr %s150, 8
        %s152 = scalar_lea.vmem %s0, %s151
        %s153 = sadd.s32 %s16, %s17
      $region28: #{convlayer_forward.1} parent=23 // pred_fallthru
        _
    $region24: #{convlayer_forward.1} parent=5 // pred_fallthru
      _
    %p154 = scmp.le.s32.totalorder 1, %s9
    %p155 = scmp.lt.s32.totalorder %s9, 3
    %p156 = pnand %p154, %p155
    %p157 = pneg %p156
    // Predicated region
    $region29: #{convlayer_forward.1} parent=5 // pred_check
      _
    $region30: #{convlayer_forward.1} parent=5 // pred_check_branch
      %159 = sbr.rel (%p156) target = $region32
    $region31: #{convlayer_forward.1} parent=5 // pred_region
      %s160 = ssub.s32 %s9, 1
      %s161 = sadd.s32 %s18, %s19
      %p162 = scmp.lt.s32.totalorder %s161, 1
      %s163 = scalar_select %p162, %s161, 1
      %s164 = smul.addr %s163, 3
      %s165 = smul.addr %s164, 8
      %s166 = scalar_lea.vmem %s0, %s165
      %p167 = pneg %p49
      %p168 = pneg %p46
      %p169 = pneg %p70
      %p170 = pneg %p67
      %p171 = pneg %p91
      %p172 = pneg %p88
      %p173 = pneg %p119
      %p174 = pneg %p116
      %s175 = smul.u32 2, %s19
      %p176 = scmp.lt.s32.totalorder %s18, 1
      %s177 = scalar_select %p176, %s18, 1
      %p178 = scmp.lt.s32.totalorder %s175, 1
      %s179 = scalar_select %p178, %s175, 1
      %s180 = smul.addr %s177, 2
      %s181 = sadd.s32 %s179, %s180
      %s182 = smul.addr %s181, 8
      %s183 = scalar_lea.vmem %s3, %s182
      %s184 = sadd.s32 %s18, %s19
      %p185 = scmp.lt.s32.totalorder %s184, 1
      %s186 = scalar_select %p185, %s184, 1
      %s187 = smul.addr %s186, 3
      %s188 = smul.addr %s187, 8
      %s189 = scalar_lea.vmem %s0, %s188
      %s190 = sadd.s32 %s18, %s19
      %s191 = smul.u32 2, %s19
      %p192 = scmp.lt.s32.totalorder %s18, 1
      %s193 = scalar_select %p192, %s18, 1
      %p194 = scmp.lt.s32.totalorder %s191, 1
      %s195 = scalar_select %p194, %s191, 1
      %s196 = smul.addr %s193, 2
      %s197 = sadd.s32 %s195, %s196
      %s198 = smul.addr %s197, 8
      %s199 = scalar_lea.vmem %s3, %s198
      %s200 = smul.u32 2, %s19
      %v201 = vld [vmem:[%s189] sm:$0xff]
      %v202 = vld [vmem:[%s189 + $0x8] sm:$0xff]
      %v203 = vld [vmem:[%s1] sm:$0xff]
      %v204 = vld [vmem:[%s1 + $0x8] sm:$0xff]
      %v205 = vld [vmem:[%s1 + $0x10] sm:$0xff]
      %v206 = vld [vmem:[%s1 + $0x18] sm:$0xff]
      %v207 = vld [vmem:[%s1 + $0x20] sm:$0xff]
      %v208 = vld [vmem:[%s1 + $0x28] sm:$0xff]
      %v209 = vld [vmem:[%s1 + $0x30] sm:$0xff]
      %v210 = vld [vmem:[%s1 + $0x38] sm:$0xff]
      %v211 = vld [vmem:[%s1 + $0x40] sm:$0xff]
      %v212 = vld [vmem:[%s189 + $0x1] sm:$0xff]
      %v213 = vld [vmem:[%s189 + $0x9] sm:$0xff]
      %s214 = scalar_lea.vmem %s1, 72
      %v215 = vld [vmem:[%s214] sm:$0xff]
      %v216 = vld [vmem:[%s214 + $0x8] sm:$0xff]
      %v217 = vld [vmem:[%s214 + $0x10] sm:$0xff]
      %v218 = vld [vmem:[%s214 + $0x18] sm:$0xff]
      %v219 = vld [vmem:[%s214 + $0x20] sm:$0xff]
      %v220 = vld [vmem:[%s214 + $0x28] sm:$0xff]
      %v221 = vld [vmem:[%s214 + $0x30] sm:$0xff]
      %v222 = vld [vmem:[%s214 + $0x38] sm:$0xff]
      %v223 = vld [vmem:[%s214 + $0x40] sm:$0xff]
      %vm224 = vcmask 588800
      %v226 = vsel %vm224, %v212, 0
      %v229 = vsel %vm224, %v213, 0
      %231 = vmatpush.msra.mxu0 0.0
      %232 = vmatpush.msra.mxu0 0.0
      %233 = vmatpush.msra.mxu0 0.0
      %234 = vmatpush.msra.mxu0 0.0
      %235 = vmatpush.msra.mxu0 0.0
      %236 = vmatpush.msra.mxu0 0.0
      %237 = vmatpush.msra.mxu0 0.0
      %238 = vmatpush.msra.mxu0 %v223
      %239 = vmatpush.msra.mxu0 %v222
      %240 = vmatpush.msra.mxu0 %v221
      %241 = vmatpush.msra.mxu0 %v220
      %242 = vmatpush.msra.mxu0 %v219
      %243 = vmatpush.msra.mxu0 %v218
      %244 = vmatpush.msra.mxu0 %v217
      %245 = vmatpush.msra.mxu0 %v216
      %246 = vmatpush.msra.mxu0 %v215
      %247 = vmatmul.f32.gmra.mxu0 %v226
      %v248 = vpop.f32.mrf.mxu0
      %v249 = vadd.f32 0.0, %v248
      %250 = vmatmul.f32.gmra.mxu0 %v229
      %v251 = vpop.f32.mrf.mxu0
      %v252 = vadd.f32 0.0, %v251
      %253 = vdwg.mxu0
      %v255 = vsel %vm224, %v201, 0
      %v258 = vsel %vm224, %v202, 0
      %260 = vmatpush.msra.mxu0 0.0
      %261 = vmatpush.msra.mxu0 0.0
      %262 = vmatpush.msra.mxu0 0.0
      %263 = vmatpush.msra.mxu0 0.0
      %264 = vmatpush.msra.mxu0 0.0
      %265 = vmatpush.msra.mxu0 0.0
      %266 = vmatpush.msra.mxu0 0.0
      %267 = vmatpush.msra.mxu0 %v211
      %268 = vmatpush.msra.mxu0 %v210
      %269 = vmatpush.msra.mxu0 %v209
      %270 = vmatpush.msra.mxu0 %v208
      %271 = vmatpush.msra.mxu0 %v207
      %272 = vmatpush.msra.mxu0 %v206
      %273 = vmatpush.msra.mxu0 %v205
      %274 = vmatpush.msra.mxu0 %v204
      %275 = vmatpush.msra.mxu0 %v203
      %276 = vmatmul.f32.gmra.mxu0 %v255
      %v277 = vpop.f32.mrf.mxu0
      %v278 = vadd.f32 %v249, %v277
      %279 = vmatmul.f32.gmra.mxu0 %v258
      %v280 = vpop.f32.mrf.mxu0
      %v281 = vadd.f32 %v252, %v280
      %282 = vdwg.mxu0
      %v283 = vld [vmem:[%s189 + $0x2] sm:$0xff]
      %v284 = vld [vmem:[%s189 + $0xa] sm:$0xff]
      %s285 = scalar_lea.vmem %s1, 144
      %v286 = vld [vmem:[%s285] sm:$0xff]
      %v287 = vld [vmem:[%s285 + $0x8] sm:$0xff]
      %v288 = vld [vmem:[%s285 + $0x10] sm:$0xff]
      %v289 = vld [vmem:[%s285 + $0x18] sm:$0xff]
      %v290 = vld [vmem:[%s285 + $0x20] sm:$0xff]
      %v291 = vld [vmem:[%s285 + $0x28] sm:$0xff]
      %v292 = vld [vmem:[%s285 + $0x30] sm:$0xff]
      %v293 = vld [vmem:[%s285 + $0x38] sm:$0xff]
      %v294 = vld [vmem:[%s285 + $0x40] sm:$0xff]
      %v296 = vsel %vm224, %v283, 0
      %v299 = vsel %vm224, %v284, 0
      %301 = vmatpush.msra.mxu0 0.0
      %302 = vmatpush.msra.mxu0 0.0
      %303 = vmatpush.msra.mxu0 0.0
      %304 = vmatpush.msra.mxu0 0.0
      %305 = vmatpush.msra.mxu0 0.0
      %306 = vmatpush.msra.mxu0 0.0
      %307 = vmatpush.msra.mxu0 0.0
      %308 = vmatpush.msra.mxu0 %v294
      %309 = vmatpush.msra.mxu0 %v293
      %310 = vmatpush.msra.mxu0 %v292
      %311 = vmatpush.msra.mxu0 %v291
      %312 = vmatpush.msra.mxu0 %v290
      %313 = vmatpush.msra.mxu0 %v289
      %314 = vmatpush.msra.mxu0 %v288
      %315 = vmatpush.msra.mxu0 %v287
      %316 = vmatpush.msra.mxu0 %v286
      %317 = vmatmul.f32.gmra.mxu0 %v296
      %v318 = vpop.f32.mrf.mxu0
      %v319 = vadd.f32 0.0, %v318
      %320 = vmatmul.f32.gmra.mxu0 %v299
      %v321 = vpop.f32.mrf.mxu0
      %v322 = vadd.f32 0.0, %v321
      %323 = vdwg.mxu0
      %v324 = vadd.f32 %v278, %v319
      %v325 = vadd.f32 %v281, %v322
      %v326 = vld [vmem:[%s2] sm:$0x1]
      %v328 = vperm.slane %v326, 0
      %v330 = vadd.f32 %v324, %v328
      %v331 = vadd.f32 %v325, %v328
      %v332 = vmax.f32 %v330, 0.0
      %v333 = vmax.f32 %v331, 0.0
      %334 = vst [vmem:[%s199] sm:$0xff] %v332
      %335 = vst [vmem:[%s199 + $0x8] sm:$0xff] %v333
      %s336 = smul.u32 2, %s19
      %p337 = scmp.lt.s32.totalorder %s18, 1
      %s338 = scalar_select %p337, %s18, 1
      %p339 = scmp.lt.s32.totalorder %s336, 1
      %s340 = scalar_select %p339, %s336, 1
      %s341 = smul.addr %s338, 2
      %s342 = sadd.s32 %s340, %s341
      %s343 = smul.addr %s342, 8
      %s344 = scalar_lea.vmem %s3, %s343
      // Predicated region
      $region33: #{convlayer_forward.1} parent=31 // pred_check
        %p345 = pneg %p116
      $region34: #{convlayer_forward.1} parent=31 // pred_check_branch
        %347 = sbr.rel (%p345) target = $region36
      $region35: #{convlayer_forward.1} parent=31 // pred_region
        %s348 = smul.u32 2, %s19
      $region36: #{convlayer_forward.1} parent=31 // pred_fallthru
        _
    $region32: #{convlayer_forward.1} parent=5 // pred_fallthru
      _
    %p349 = scmp.le.s32.totalorder 2, %s9
    // Predicated region
    $region37: #{convlayer_forward.1} parent=5 // pred_check
      %p350 = pneg %p349
    $region38: #{convlayer_forward.1} parent=5 // pred_check_branch
      %352 = sbr.rel (%p350) target = $region40
    $region39: #{convlayer_forward.1} parent=5 // pred_region
      %s353 = ssub.s32 %s9, 2
      // Predicated region
      $region41: #{convlayer_forward.1} parent=39 // pred_check
        %p354 = pneg %p122
      $region42: #{convlayer_forward.1} parent=39 // pred_check_branch
        %356 = sbr.rel (%p354) target = $region44
      $region43: #{convlayer_forward.1} parent=39 // pred_region
        %s357 = smul.u32 2, %s21
        %p358 = scmp.lt.s32.totalorder %s20, 1
        %s359 = scalar_select %p358, %s20, 1
        %p360 = scmp.lt.s32.totalorder %s357, 1
        %s361 = scalar_select %p360, %s357, 1
        %s362 = smul.addr %s359, 2
        %s363 = sadd.s32 %s361, %s362
        %s364 = smul.addr %s363, 8
        %s365 = scalar_lea.vmem %s3, %s364
      $region44: #{convlayer_forward.1} parent=39 // pred_fallthru
        _
    $region40: #{convlayer_forward.1} parent=5 // pred_fallthru
      _
  $region6: #{convlayer_forward.1} parent=0 // loop_footer
    %s13 = sadd.s32 1, %s9
  $region7: #{convlayer_forward.1} parent=0 // loop_footer_branch
    %8 = sbr.rel target = $region3
  $region8: #{convlayer_forward.1} parent=0 // loop_exit
    _

</llo_original>
